<compile_context>
chip_gen: v5e
topology: v5e:2x2
jax: 0.10.0
libtpu: 0.0.40
codegen_flags: <defaults>
</compile_context>

<pallas_src>
import functools

import numpy as np

import jax
import jax.numpy as jnp
from jax.experimental import pallas as pl
from jax.experimental.pallas import tpu as pltpu


# ----------------------------- fused Pallas kernel -----------------------------

def _amodel_fused_kernel(x_ref, slab_ref, o_ref, *, k_rows):
    # slab rows [0, k_rows)   : M   (folded whole-forward linear map)
    # slab row  [k_rows]      : c   (folded whole-forward bias)
    m = slab_ref[0:k_rows, :]
    c = slab_ref[k_rows:k_rows + 1, :]
    o_ref[...] = jnp.dot(x_ref[...], m, preferred_element_type=jnp.float32) + c


# --------------------- prep-time (parameter/shape-only) folding ---------------------

def _compose_linear(w1t, b1, w2t, b2, n_iter):
    """Fold `for _ in range(n_iter): x = x@W1t+b1; x = x@W2t+b2` into (W_eff, b_eff).
    Float64 throughout."""
    f64 = np.float64
    w1t = np.asarray(w1t, f64); w2t = np.asarray(w2t, f64)
    b1 = np.asarray(b1, f64);   b2 = np.asarray(b2, f64)
    A = w1t @ w2t
    c = b1 @ w2t + b2                       # [1, F]
    W_eff = np.eye(A.shape[0], dtype=f64)
    b_eff = np.zeros_like(c)
    for _ in range(n_iter):
        W_eff = W_eff @ A
        b_eff = b_eff @ A + c
    return W_eff, b_eff


def _transpose_conv_equivalent_weight(wt, groups):
    """ConvTranspose2d weight [IC, OC/G, k, k] -> equivalent forward-conv weight
    [OC, IC/G, k, k] (per-group in/out swap + spatial flip)."""
    wt = np.asarray(wt, np.float64)
    IC, OCpg, k, _ = wt.shape
    ICpg = IC // groups
    wg = wt.reshape(groups, ICpg, OCpg, k, k)[:, :, :, ::-1, ::-1]
    return np.transpose(wg, (0, 2, 1, 3, 4)).reshape(groups * OCpg, ICpg, k, k).copy()


def _build_conv_tap_operators(cin, cout, groups, weight, H, W, k,
                              stride, pad, dil, up):
    """Per-tap operators (per single batch element) for a grouped conv on activations
    laid out [c, h*W+w]:

        Z_out = sum_t  W_t @ Z_in @ R_t

      weight: [cout, cin//groups, k, k] forward-conv weight (already flipped if this
              is the equivalent of a transposed conv).
      up:     input grid is the zero-upsampled (factor `up`) version of an (H, W) map.
      Negative `pad` (possible for transposed convs) is handled by the bound checks.

    Returns (W [T, cout, cin], R [T, H*W, OH*OW], OH, OW); all-zero taps pruned.
    """
    f64 = np.float64
    weight = np.asarray(weight, f64)
    icpg, ocpg = cin // groups, cout // groups
    Hu, Wu = (H - 1) * up + 1, (W - 1) * up + 1
    eff = dil * (k - 1) + 1
    OH = (Hu + 2 * pad - eff) // stride + 1
    OW = (Wu + 2 * pad - eff) // stride + 1
    w_ops, r_ops = [], []
    for kh in range(k):
        for kw in range(k):
            R = np.zeros((H * W, OH * OW), f64)
            for oh in range(OH):
                for ow in range(OW):
                    ih_u = oh * stride + kh * dil - pad
                    iw_u = ow * stride + kw * dil - pad
                    if (0 <= ih_u < Hu and 0 <= iw_u < Wu
                            and ih_u % up == 0 and iw_u % up == 0):
                        R[(ih_u // up) * W + (iw_u // up), oh * OW + ow] = 1.0
            if not R.any():
                continue                      # tap never touches a valid sample
            Wt = np.zeros((cout, cin), f64)   # block-diagonal over groups
            for g in range(groups):
                for oc in range(ocpg):
                    for ic in range(icpg):
                        Wt[g * ocpg + oc, g * icpg + ic] = weight[g * ocpg + oc, ic, kh, kw]
            w_ops.append(Wt)
            r_ops.append(R)
    if not w_ops:                             # degenerate: conv output is bias only
        w_ops = [np.zeros((cout, cin), f64)]
        r_ops = [np.zeros((H * W, OH * OW), f64)]
    return np.stack(w_ops), np.stack(r_ops), OH, OW


def prepare_operands(params, x_shape, *, groups=3, stride=2, pad=1, dil=2):
    """Fold the ENTIRE forward into one per-batch affine map and pack it into a
    single lane-dense f32 slab.  All composition in float64."""
    f64 = np.float64
    N, C, H, W = x_shape

    # ---- linear stage operator (per batch element, layout [C, H*W]) ----
    W_eff, b_eff = _compose_linear(params["w1t"], params["b1"],
                                   params["w2t"], params["b2"], N)
    klin = np.kron(np.eye(H, dtype=f64), W_eff)      # [H*W, H*W]
    blin = np.tile(b_eff, (1, H))                     # [1, H*W]

    # ---- grouped dilated strided conv ----
    conv_w = np.asarray(params["conv_w"], f64)
    conv_b = np.asarray(params["conv_b"], f64)
    oc1, k1 = conv_w.shape[0], conv_w.shape[-1]
    w1, r1, OH1, OW1 = _build_conv_tap_operators(
        cin=C, cout=oc1, groups=groups, weight=conv_w,
        H=H, W=W, k=k1, stride=stride, pad=pad, dil=dil, up=1)
    b1col = conv_b.reshape(oc1, 1)

    # ---- grouped dilated strided conv-transpose (forward conv on upsampled grid) ----
    convt_w = np.asarray(params["convt_w"], f64)
    convt_b = np.asarray(params["convt_b"], f64)
    w_eq = _transpose_conv_equivalent_weight(convt_w, groups)
    oc2, k2 = w_eq.shape[0], w_eq.shape[-1]
    eq_pad = dil * (k2 - 1) - pad
    w2, r2, OH2, OW2 = _build_conv_tap_operators(
        cin=convt_w.shape[0], cout=oc2, groups=groups, weight=w_eq,
        H=OH1, W=OW1, k=k2, stride=1, pad=eq_pad, dil=dil, up=stride)
    b2col = convt_b.reshape(oc2, 1)

    in_dim = C * H * W
    out_dim = oc2 * OH2 * OW2

    # ---- compose the whole per-batch affine chain: vec(out) = vec(x) @ M + c ----
    def _linear_part(Xb):                 # Xb: [B, C, H*W] -> [B, oc2, OH2*OW2]
        Z0 = Xb @ klin
        Z1 = np.zeros((Xb.shape[0], oc1, OH1 * OW1), f64)
        for t in range(w1.shape[0]):
            Z1 = Z1 + np.matmul(w1[t], Z0 @ r1[t])
        Z2 = np.zeros((Xb.shape[0], oc2, OH2 * OW2), f64)
        for t in range(w2.shape[0]):
            Z2 = Z2 + np.matmul(w2[t], Z1 @ r2[t])
        return Z2

    def _affine_chain(X):                 # X: [C, H*W] -> [oc2, OH2*OW2] (with biases)
        Z0 = X @ klin + blin
        Z1 = np.broadcast_to(b1col, (oc1, OH1 * OW1)).copy()
        for t in range(w1.shape[0]):
            Z1 = Z1 + w1[t] @ (Z0 @ r1[t])
        Z2 = np.broadcast_to(b2col, (oc2, OH2 * OW2)).copy()
        for t in range(w2.shape[0]):
            Z2 = Z2 + w2[t] @ (Z1 @ r2[t])
        return Z2

    c_vec = _affine_chain(np.zeros((C, H * W), f64)).reshape(1, out_dim)
    basis = np.eye(in_dim, dtype=f64).reshape(in_dim, C, H * W)
    M = _linear_part(basis).reshape(in_dim, out_dim)

    # ---- pack (M | c) into ONE lane-dense f32 slab (single constant DMA) ----
    out_pad = max(128, ((out_dim + 127) // 128) * 128)     # lane-dense output width
    slab_rows = ((in_dim + 1 + 7) // 8) * 8                # sublane-aligned rows
    slab = np.zeros((slab_rows, out_pad), np.float32)
    slab[:in_dim, :out_dim] = M.astype(np.float32)
    slab[in_dim, :out_dim] = c_vec.astype(np.float32)

    return dict(
        slab=jnp.asarray(slab),
        in_dim=in_dim, out_dim=out_dim, out_pad=out_pad,
        out_shape=(N, oc2, OH2, OW2),
    )


# ------------------------------ forward wrapper ------------------------------

def make_amodel_forward(ops):
    N, oc2, OH2, OW2 = ops["out_shape"]
    in_dim, out_dim, out_pad = ops["in_dim"], ops["out_dim"], ops["out_pad"]
    slab = ops["slab"]

    kern = functools.partial(_amodel_fused_kernel, k_rows=in_dim)

    call = pl.pallas_call(
        kern,
        out_shape=jax.ShapeDtypeStruct((N, out_pad), jnp.float32),
        in_specs=[pl.BlockSpec(memory_space=pltpu.MemorySpace.VMEM)] * 2,
        out_specs=pl.BlockSpec(memory_space=pltpu.MemorySpace.VMEM),
    )

    @jax.jit
    def forward(x):
        n, c, h, w = x.shape
        x2 = x.reshape(n, c * h * w)                 # pure row-major reshape
        out = call(x2, slab)                          # [N, out_pad] lane-dense store
        return out[:, :out_dim].reshape(N, oc2, OH2, OW2)   # trivial slice + reshape

    return forward


# --------------------------- reference (sanity check) ---------------------------

def amodel_reference(x, p):
    N = x.shape[0]
    y = x
    for _ in range(N):
        y = y @ p["w1t"] + p["b1"][0]
        y = y @ p["w2t"] + p["b2"][0]
    y = jax.lax.conv_general_dilated(
        y, p["conv_w"], window_strides=(2, 2), padding=((1, 1), (1, 1)),
        rhs_dilation=(2, 2), feature_group_count=3,
        dimension_numbers=("NCHW", "OIHW", "NCHW")) + p["conv_b"][None, :, None, None]
    wg = p["convt_w"].reshape(3, 2, 2, 3, 3)[:, :, :, ::-1, ::-1]
    w_eq = jnp.transpose(wg, (0, 2, 1, 3, 4)).reshape(6, 2, 3, 3)
    y = jax.lax.conv_general_dilated(
        y, w_eq, window_strides=(1, 1), padding=((3, 3), (3, 3)),
        lhs_dilation=(2, 2), rhs_dilation=(2, 2), feature_group_count=3,
        dimension_numbers=("NCHW", "OIHW", "NCHW")) + p["convt_b"][None, :, None, None]
    return y


# --------------------------------- main ---------------------------------

def init_params(key, bias=True):
    ks = jax.random.split(key, 8)
    w1 = 0.5 * jax.random.normal(ks[0], (3, 3), jnp.float32)             # Linear(3,3)
    w2 = 0.5 * jax.random.normal(ks[1], (3, 3), jnp.float32)             # Linear(3,3)
    conv_w = 0.2 * jax.random.normal(ks[2], (6, 1, 3, 3), jnp.float32)   # Conv2d(3,6,3,g=3)
    convt_w = 0.2 * jax.random.normal(ks[3], (6, 2, 3, 3), jnp.float32)  # ConvT(6,6,3,g=3)
    if bias:
        b1 = 0.1 * jax.random.normal(ks[4], (3,), jnp.float32)
        b2 = 0.1 * jax.random.normal(ks[5], (3,), jnp.float32)
        conv_b = 0.1 * jax.random.normal(ks[6], (6,), jnp.float32)
        convt_b = 0.1 * jax.random.normal(ks[7], (6,), jnp.float32)
    else:
        b1 = b2 = jnp.zeros((3,), jnp.float32)
        conv_b = convt_b = jnp.zeros((6,), jnp.float32)
    return {
        "w1t": w1.T, "b1": b1.reshape(1, 3),
        "w2t": w2.T, "b2": b2.reshape(1, 3),
        "conv_w": conv_w, "conv_b": conv_b,
        "convt_w": convt_w, "convt_b": convt_b,
    }


if __name__ == "__main__":
    key = jax.random.PRNGKey(0)
    k_p, k_x = jax.random.split(key)
    params = init_params(k_p, bias=True)

    # x: [N=2, C=3 (conv channels), H=8, W=3 (linear features)]
    x = jax.random.normal(k_x, (2, 3, 8, 3), jnp.float32)

    ops = prepare_operands(params, x.shape)
    forward = make_amodel_forward(ops)

    out = jax.block_until_ready(forward(x))
    ref = jax.block_until_ready(amodel_reference(x, params))

    assert out.shape == (2, 6, 7, 3), out.shape
    max_err = float(jnp.max(jnp.abs(out - ref)))
    assert jnp.allclose(out, ref, atol=1e-4, rtol=1e-4), max_err

    print("KERNEL_OK")
</pallas_src>

<mosaic_0001>
module attributes {stable_mosaic.version = 11 : i64} {
  func.func @_amodel_fused_kernel(%arg0: memref<2x72xf32, #tpu.memory_space<vmem>>, %arg1: memref<80x128xf32, #tpu.memory_space<vmem>>, %arg2: memref<2x128xf32, #tpu.memory_space<vmem>>) attributes {dimension_semantics = [], scalar_prefetch = 0 : i64, scratch_operands = 0 : i64, tpu.core_type = #tpu.core_type<tc>} {
    %c0 = arith.constant 0 : index
    %c0_0 = arith.constant 0 : index
    %0 = vector.load %arg1[%c0, %c0_0] : memref<80x128xf32, #tpu.memory_space<vmem>>, vector<72x128xf32>
    %c72 = arith.constant 72 : index
    %c0_1 = arith.constant 0 : index
    %1 = vector.load %arg1[%c72, %c0_1] : memref<80x128xf32, #tpu.memory_space<vmem>>, vector<1x128xf32>
    %c0_2 = arith.constant 0 : index
    %c0_3 = arith.constant 0 : index
    %2 = vector.load %arg0[%c0_2, %c0_3] : memref<2x72xf32, #tpu.memory_space<vmem>>, vector<2x72xf32>
    %cst = arith.constant dense<0.000000e+00> : vector<2x128xf32>
    %3 = tpu.matmul %2, %0, %cst {dimension_numbers = #tpu.dot_dimension_numbers<[1], [0], [0], [1], [0, 0, 1, 1], [], []>} : vector<2x72xf32>, vector<72x128xf32>, vector<2x128xf32> -> vector<2x128xf32>
    %4 = vector.broadcast %1 : vector<1x128xf32> to vector<2x128xf32>
    %5 = arith.addf %3, %4 : vector<2x128xf32>
    %c0_4 = arith.constant 0 : index
    %c0_5 = arith.constant 0 : index
    %6 = vector.load %arg2[%c0_4, %c0_5] : memref<2x128xf32, #tpu.memory_space<vmem>>, vector<2x128xf32>
    tpu.vector_store %arg2[%c0_4, %c0_5], %5 {strides = array<i32>} : memref<2x128xf32, #tpu.memory_space<vmem>>, vector<2x128xf32>,
    return
  }
}

</mosaic_0001>

<llo_original>
// kernel: forward.1
$region0: #{forward.1}
  #allocation0 [shape = 'u32[]', space=smem, size = 0x4, offset = 0x4, fixed_abs, tag = 'smem constant byte address 0x4 - core index']
  #allocation1 [shape = 'u32[72,128]{1,0:T(1,128)}', space=vmem, size = 0x9000, scoped, tag = 'internal scratch']
  %s0 = inlined_call_operand.vmem [shape: f32[2,72], index: 0, kind: input, shape index: {}]
  %s1 = inlined_call_operand.vmem [shape: f32[80,128], index: 1, kind: input, shape index: {}]
  %s2 = inlined_call_operand.vmem [shape: f32[2,128], index: 2, kind: output, shape index: {}]
  %s3 = sld [smem:[#allocation0]]
  $region18: #{forward.1} parent=0
    _
  %s5 = ssub.s32 1, %s3
  %s6 = scalar_select 0, %s5, %s3
  // Predicated region
  $region2: #{forward.1} parent=0 // pred_check
    _
  $region3: #{forward.1} parent=0 // pred_check_branch
    %8 = sbr.rel (0) target = $region5
  $region4: #{forward.1} parent=0 // pred_region
    _
  $region5: #{forward.1} parent=0 // pred_fallthru
    _
  // Predicated region
  $region6: #{forward.1} parent=0 // pred_check
    _
  $region7: #{forward.1} parent=0 // pred_check_branch
    %10 = sbr.rel (0) target = $region9
  $region8: #{forward.1} parent=0 // pred_region
    _
  $region9: #{forward.1} parent=0 // pred_fallthru
    _
  %v11 = vld [vmem:[%s1] sm:$0xff]
  %v12 = vld [vmem:[%s1 + $0x8] sm:$0xff]
  %v13 = vld [vmem:[%s1 + $0x10] sm:$0xff]
  %v14 = vld [vmem:[%s1 + $0x18] sm:$0xff]
  %v15 = vld [vmem:[%s1 + $0x20] sm:$0xff]
  %v16 = vld [vmem:[%s1 + $0x28] sm:$0xff]
  %v17 = vld [vmem:[%s1 + $0x30] sm:$0xff]
  %v18 = vld [vmem:[%s1 + $0x38] sm:$0xff]
  %v19 = vld [vmem:[%s1 + $0x40] sm:$0xff]
  %v20 = vld [vmem:[%s1 + $0x48] sm:$0x1]
  %v21 = vld [vmem:[%s0] sm:$0x3]
  %v22 = vperm.slane %v20, 0
  %vm23 = vcmask 588800
  %v25 = vsel %vm23, %v21, 0
  %27 = vmatpush.msra.mxu0 0.0
  %28 = vmatpush.msra.mxu0 0.0
  %29 = vmatpush.msra.mxu0 0.0
  %30 = vmatpush.msra.mxu0 0.0
  %31 = vmatpush.msra.mxu0 0.0
  %32 = vmatpush.msra.mxu0 0.0
  %33 = vmatpush.msra.mxu0 0.0
  %34 = vmatpush.msra.mxu0 %v19
  %35 = vmatpush.msra.mxu0 %v18
  %36 = vmatpush.msra.mxu0 %v17
  %37 = vmatpush.msra.mxu0 %v16
  %38 = vmatpush.msra.mxu0 %v15
  %39 = vmatpush.msra.mxu0 %v14
  %40 = vmatpush.msra.mxu0 %v13
  %41 = vmatpush.msra.mxu0 %v12
  %42 = vmatpush.msra.mxu0 %v11
  %43 = vmatmul.f32.gmra.mxu0 %v25
  %v44 = vpop.f32.mrf.mxu0
  %v45 = vadd.f32 %v22, %v44
  %46 = vdwg.mxu0
  %47 = vst [vmem:[%s2] sm:$0x3] %v45
  // Predicated region
  $region10: #{forward.1} parent=0 // pred_check
    _
  $region11: #{forward.1} parent=0 // pred_check_branch
    %49 = sbr.rel (0) target = $region13
  $region12: #{forward.1} parent=0 // pred_region
    _
  $region13: #{forward.1} parent=0 // pred_fallthru
    _
  // Predicated region
  $region14: #{forward.1} parent=0 // pred_check
    _
  $region15: #{forward.1} parent=0 // pred_check_branch
    %51 = sbr.rel (0) target = $region17
  $region16: #{forward.1} parent=0 // pred_region
    _
  $region17: #{forward.1} parent=0 // pred_fallthru
    _

</llo_original>
